<compile_context>
chip_gen: v5e
topology: v5e:2x2
jax: 0.10.0
libtpu: 0.0.40
codegen_flags: <defaults>
</compile_context>

<pallas_src>
import jax
import jax.numpy as jnp
from jax.experimental import pallas as pl
from jax.experimental.pallas import tpu as pltpu

_SMOOTH = 1e-6
_LANES = 512                      # lane-dense last dim (multiple of 128)
_ROWS_MAX = 2048                  # max sublane rows per grid step (multiple of 8)
_VMEM_LIMIT_BYTES = 40 * 1024 * 1024


def _bce_block_sums_kernel(yt_ref, yp_ref, o_ref):
    # Cast to f32 inside the kernel (inputs stream at native width).
    yt = yt_ref[...].astype(jnp.float32)                       # (rb, L)
    yp = yp_ref[...].astype(jnp.float32)                       # (rb, L)
    term = (yt * jnp.log(yp + _SMOOTH)
            + (1.0 - yt) * jnp.log(1.0 - yp + _SMOOTH))
    # Single sublane-axis reduction -> lane-dense (1, L) partial sums.
    o_ref[...] = jnp.sum(term, axis=0, keepdims=True).reshape(1, 1, term.shape[1])


def _pallas_partial_sums(yt2d, yp2d, rb):
    rows, lanes = yt2d.shape
    nb = rows // rb
    assert nb * rb == rows, (rows, rb)
    return pl.pallas_call(
        _bce_block_sums_kernel,
        out_shape=jax.ShapeDtypeStruct((nb, 1, lanes), jnp.float32),
        grid_spec=pltpu.PrefetchScalarGridSpec(
            num_scalar_prefetch=0,
            grid=(nb,),
            in_specs=[
                pl.BlockSpec((rb, lanes), lambda g: (g, 0)),   # y_true block
                pl.BlockSpec((rb, lanes), lambda g: (g, 0)),   # y_pred block
            ],
            out_specs=pl.BlockSpec((1, 1, lanes), lambda g: (g, 0, 0)),
        ),
        compiler_params=pltpu.CompilerParams(
            dimension_semantics=("parallel",),                 # independent blocks
            vmem_limit_bytes=_VMEM_LIMIT_BYTES,
        ),
    )(yt2d, yp2d)


def b_crossentropy(y_pred, y_true, *, lanes=_LANES, rows_per_block_max=_ROWS_MAX):
    """Pallas TPU implementation of the PyTorch B_crossentropy.forward.

    y_pred, y_true: arrays of identical shape (probabilities / targets).
    returns: scalar float32 loss.
    """
    assert y_pred.shape == y_true.shape, (y_pred.shape, y_true.shape)

    total = 1
    for d in y_pred.shape:
        total *= int(d)

    yp_flat = jnp.ravel(y_pred)      # native dtype, no upcast in the wrapper
    yt_flat = jnp.ravel(y_true)

    rows_full = total // lanes
    loss_sum = jnp.float32(0.0)

    # ---- lane-aligned prefix -> Pallas kernel ------------------------------
    main_elems = 0
    if rows_full > 0:
        if rows_full <= rows_per_block_max:
            rb = rows_full                                  # single block == full dims
        else:
            rb = max(8, (rows_per_block_max // 8) * 8)      # multiple of 8 sublanes
        nb = rows_full // rb
        main_rows = nb * rb
        main_elems = main_rows * lanes
        yt2d = yt_flat[:main_elems].reshape(main_rows, lanes)
        yp2d = yp_flat[:main_elems].reshape(main_rows, lanes)
        partials = _pallas_partial_sums(yt2d, yp2d, rb)
        loss_sum = loss_sum + jnp.sum(partials)

    # ---- <1-block ragged remainder -> tiny plain-JAX partial sum -----------
    if main_elems < total:
        yt_t = yt_flat[main_elems:].astype(jnp.float32)
        yp_t = yp_flat[main_elems:].astype(jnp.float32)
        loss_sum = loss_sum + jnp.sum(
            yt_t * jnp.log(yp_t + _SMOOTH)
            + (1.0 - yt_t) * jnp.log(1.0 - yp_t + _SMOOTH))

    # final mean and negation hoisted out of the per-step path
    return -(loss_sum / jnp.float32(total))


def _b_crossentropy_ref(y_pred, y_true):
    # pure-JAX reference (mirrors the PyTorch module)
    return -jnp.mean(y_true * jnp.log(y_pred + _SMOOTH)
                     + (1.0 - y_true) * jnp.log(1.0 - y_pred + _SMOOTH))


if __name__ == "__main__":
    key = jax.random.PRNGKey(0)
    k1, k2, k3, k4, k5, k6 = jax.random.split(key, 6)

    # primary test: (batch=2, channels=4, spatial=16x16), lane-aligned total
    shape = (2, 4, 16, 16)
    y_pred = jax.random.uniform(k1, shape, jnp.float32, minval=0.02, maxval=0.98)
    y_true = (jax.random.uniform(k2, shape, jnp.float32) > 0.5).astype(jnp.float32)

    out = jax.block_until_ready(b_crossentropy(y_pred, y_true))
    ref = _b_crossentropy_ref(y_pred, y_true)
    assert jnp.allclose(out, ref, rtol=1e-5, atol=1e-5), (out, ref)

    # ragged test: total = 210 elements -> handled entirely by the tail path
    shape2 = (2, 3, 5, 7)
    y_pred2 = jax.random.uniform(k3, shape2, jnp.float32, minval=0.02, maxval=0.98)
    y_true2 = jax.random.uniform(k4, shape2, jnp.float32)

    out2 = jax.block_until_ready(b_crossentropy(y_pred2, y_true2))
    ref2 = _b_crossentropy_ref(y_pred2, y_true2)
    assert jnp.allclose(out2, ref2, rtol=1e-5, atol=1e-5), (out2, ref2)

    # multi-block + row-remainder test: 26 lane rows, forced 8-row blocks
    # -> grid of 3 blocks (24 rows) via Pallas + 2-row remainder via tail path
    shape3 = (26, 512)
    y_pred3 = jax.random.uniform(k5, shape3, jnp.float32, minval=0.02, maxval=0.98)
    y_true3 = (jax.random.uniform(k6, shape3, jnp.float32) > 0.5).astype(jnp.float32)

    out3 = jax.block_until_ready(
        b_crossentropy(y_pred3, y_true3, rows_per_block_max=8))
    ref3 = _b_crossentropy_ref(y_pred3, y_true3)
    assert jnp.allclose(out3, ref3, rtol=1e-5, atol=1e-5), (out3, ref3)

    print("KERNEL_OK")
</pallas_src>

<mosaic_0001>
module attributes {stable_mosaic.version = 11 : i64} {
  func.func @_bce_block_sums_kernel(%arg0: i32, %arg1: memref<4x512xf32, #tpu.memory_space<vmem>>, %arg2: memref<4x512xf32, #tpu.memory_space<vmem>>, %arg3: memref<1x1x512xf32, #tpu.memory_space<vmem>>) attributes {dimension_semantics = [#tpu.dimension_semantics<parallel>], iteration_bounds = array<i64: 1>, scalar_prefetch = 0 : i64, scratch_operands = 0 : i64, tpu.core_type = #tpu.core_type<tc>, window_params = [{transform_indices = @transform_0, window_bounds = array<i64: 4, 512>}, {transform_indices = @transform_1, window_bounds = array<i64: 4, 512>}, {transform_indices = @transform_2, window_bounds = array<i64: 1, 1, 512>}]} {
    %c0 = arith.constant 0 : index
    %c0_0 = arith.constant 0 : index
    %0 = vector.load %arg1[%c0, %c0_0] : memref<4x512xf32, #tpu.memory_space<vmem>>, vector<4x512xf32>
    %c0_1 = arith.constant 0 : index
    %c0_2 = arith.constant 0 : index
    %1 = vector.load %arg2[%c0_1, %c0_2] : memref<4x512xf32, #tpu.memory_space<vmem>>, vector<4x512xf32>
    %cst = arith.constant 9.99999997E-7 : f32
    %2 = vector.broadcast %cst : f32 to vector<4x512xf32>
    %3 = arith.addf %1, %2 : vector<4x512xf32>
    %4 = math.log %3 : vector<4x512xf32>
    %5 = arith.mulf %0, %4 : vector<4x512xf32>
    %cst_3 = arith.constant 1.000000e+00 : f32
    %6 = vector.broadcast %cst_3 : f32 to vector<4x512xf32>
    %7 = arith.subf %6, %0 : vector<4x512xf32>
    %cst_4 = arith.constant 1.000000e+00 : f32
    %8 = vector.broadcast %cst_4 : f32 to vector<4x512xf32>
    %9 = arith.subf %8, %1 : vector<4x512xf32>
    %cst_5 = arith.constant 9.99999997E-7 : f32
    %10 = vector.broadcast %cst_5 : f32 to vector<4x512xf32>
    %11 = arith.addf %9, %10 : vector<4x512xf32>
    %12 = math.log %11 : vector<4x512xf32>
    %13 = arith.mulf %7, %12 : vector<4x512xf32>
    %14 = arith.addf %5, %13 : vector<4x512xf32>
    %cst_6 = arith.constant dense<0.000000e+00> : vector<512xf32>
    %15 = vector.multi_reduction <add>, %14, %cst_6 [0] : vector<4x512xf32> to vector<512xf32>
    %16 = vector.shape_cast %15 : vector<512xf32> to vector<1x512xf32>
    %17 = vector.shape_cast %16 : vector<1x512xf32> to vector<1x1x512xf32>
    %c0_7 = arith.constant 0 : index
    %c0_8 = arith.constant 0 : index
    %c0_9 = arith.constant 0 : index
    %18 = vector.load %arg3[%c0_7, %c0_8, %c0_9] : memref<1x1x512xf32, #tpu.memory_space<vmem>>, vector<1x1x512xf32>
    tpu.vector_store %arg3[%c0_7, %c0_8, %c0_9], %17 {strides = array<i32>} : memref<1x1x512xf32, #tpu.memory_space<vmem>>, vector<1x1x512xf32>,
    return
  }
  func.func @transform_0(%arg0: i32) -> (i32, i32) {
    %c0_i32 = arith.constant 0 : i32
    %c0_i32_0 = arith.constant 0 : i32
    return %arg0, %c0_i32 : i32, i32
  }
  func.func @transform_1(%arg0: i32) -> (i32, i32) {
    %c0_i32 = arith.constant 0 : i32
    %c0_i32_0 = arith.constant 0 : i32
    return %arg0, %c0_i32 : i32, i32
  }
  func.func @transform_2(%arg0: i32) -> (i32, i32, i32) {
    %c0_i32 = arith.constant 0 : i32
    %c0_i32_0 = arith.constant 0 : i32
    %c0_i32_1 = arith.constant 0 : i32
    return %arg0, %c0_i32, %c0_i32_0 : i32, i32, i32
  }
}

</mosaic_0001>

<llo_original>
// kernel: tpu_custom_call.1
$region0: #{tpu_custom_call.1}
  #allocation0 [shape = 'u32[]', space=smem, size = 0x4, offset = 0x4, fixed_abs, tag = 'smem constant byte address 0x4 - core index']
  #allocation1 [shape = 'u32[72,128]{1,0:T(1,128)}', space=vmem, size = 0x9000, scoped, tag = 'internal scratch']
  %s0 = inlined_call_operand.hbm [shape: f32[4,512], index: 0, kind: input, shape index: {}]
  %s1 = inlined_call_operand.hbm [shape: f32[4,512], index: 1, kind: input, shape index: {}]
  %s2 = inlined_call_operand.hbm [shape: f32[1,1,512], index: 2, kind: output, shape index: {}]
  %s3 = sld [smem:[#allocation0]]
  $region26: #{tpu_custom_call.1} parent=0
    _
  %s5 = ssub.s32 1, %s3
  %s6 = scalar_select 0, %s5, %s3
  $region1: #{tpu_custom_call.1} parent=0
    #allocation2 [shape = 'u8[8192]{0}', space=vmem, size = 0x2000, scoped, tag = 'input window, operand 0, single buffered']
    #allocation3 [shape = 's32[1]{0}', space=sflag, size = 0x4, scoped, tag = 'scoped memory for tpu_custom_call.1']
    #allocation4 [shape = 's32[1]{0}', space=sflag, size = 0x4, scoped, tag = 'scoped memory for tpu_custom_call.1']
    #allocation5 [shape = 'u8[8192]{0}', space=vmem, size = 0x2000, scoped, tag = 'input window, operand 1, single buffered']
    #allocation6 [shape = 's32[1]{0}', space=sflag, size = 0x4, scoped, tag = 'scoped memory for tpu_custom_call.1']
    #allocation7 [shape = 'u8[2048]{0}', space=vmem, size = 0x800, scoped, tag = 'output window, operand 0, single buffered']
    %7 = vsyncpa [#allocation3], 0
    %8 = vsyncpa [#allocation6], 0
    %9 = vsyncpa [#allocation4], 0
    // Predicated region
    $region2: #{tpu_custom_call.1} parent=1 // pred_check
      _
    $region3: #{tpu_custom_call.1} parent=1 // pred_check_branch
      %11 = sbr.rel (0) target = $region5
    $region4: #{tpu_custom_call.1} parent=1 // pred_region
      %13 = vsyncadd [#allocation3], 0
      %s15 = sshll.u32 %s0, 4
      %s16 = int_to_ptr.hbm [resolvable:$true] %s15
      %s17 = sshll.u32 [#allocation2], 4
      %s18 = int_to_ptr.vmem [resolvable:$true] %s17
      %20 = dma.hbm_to_vmem [thread:$0]  %s16, 256, %s18, [#allocation3]
    $region5: #{tpu_custom_call.1} parent=1 // pred_fallthru
      _
    // Predicated region
    $region6: #{tpu_custom_call.1} parent=1 // pred_check
      _
    $region7: #{tpu_custom_call.1} parent=1 // pred_check_branch
      %22 = sbr.rel (0) target = $region9
    $region8: #{tpu_custom_call.1} parent=1 // pred_region
      %24 = vsyncadd [#allocation6], 0
      %s26 = sshll.u32 %s1, 4
      %s27 = int_to_ptr.hbm [resolvable:$true] %s26
      %s28 = sshll.u32 [#allocation5], 4
      %s29 = int_to_ptr.vmem [resolvable:$true] %s28
      %31 = dma.hbm_to_vmem [thread:$0]  %s27, 256, %s29, [#allocation6]
    $region9: #{tpu_custom_call.1} parent=1 // pred_fallthru
      _
    // Predicated region
    $region10: #{tpu_custom_call.1} parent=1 // pred_check
      _
    $region11: #{tpu_custom_call.1} parent=1 // pred_check_branch
      %33 = sbr.rel (0) target = $region13
    $region12: #{tpu_custom_call.1} parent=1 // pred_region
      %35 = dma.done [#allocation3], 256
    $region13: #{tpu_custom_call.1} parent=1 // pred_fallthru
      _
    // Predicated region
    $region14: #{tpu_custom_call.1} parent=1 // pred_check
      _
    $region15: #{tpu_custom_call.1} parent=1 // pred_check_branch
      %37 = sbr.rel (0) target = $region17
    $region16: #{tpu_custom_call.1} parent=1 // pred_region
      %39 = dma.done [#allocation6], 256
    $region17: #{tpu_custom_call.1} parent=1 // pred_fallthru
      _
    %v40 = vld [vmem:[#allocation2] sm:$0xff]
    %v41 = vld [vmem:[#allocation2 + $0x8] sm:$0xff]
    %v42 = vld [vmem:[#allocation5] sm:$0xff]
    %v43 = vld [vmem:[#allocation5 + $0x8] sm:$0xff]
    %v44 = vadd.f32 %v42, 1e-06
    %v45 = vadd.f32 %v43, 1e-06
    %v46 = vlog2.pop %v44
    %v47 = vmul.f32 %v46, 0.6931472
    %v48 = vlog2.pop %v45
    %v49 = vmul.f32 %v48, 0.6931472
    %v50 = vmul.f32 %v40, %v47
    %v51 = vmul.f32 %v41, %v49
    %v52 = vsub.f32 1.0, %v40
    %v53 = vsub.f32 1.0, %v41
    %v54 = vsub.f32 1.0, %v42
    %v55 = vsub.f32 1.0, %v43
    %v56 = vadd.f32 %v54, 1e-06
    %v57 = vadd.f32 %v55, 1e-06
    %v58 = vlog2.pop %v56
    %v59 = vmul.f32 %v58, 0.6931472
    %v60 = vlog2.pop %v57
    %v61 = vmul.f32 %v60, 0.6931472
    %v62 = vmul.f32 %v52, %v59
    %v63 = vmul.f32 %v53, %v61
    %v64 = vadd.f32 %v50, %v62
    %v65 = vadd.f32 %v51, %v63
    %68 = vst [vmem:[#allocation1] ss:$2 sm:$0xff] %v64
    %s69 = scalar_lea.vmem [#allocation1], 16
    %70 = vst [vmem:[%s69] ss:$2 sm:$0xff] %v65
    %v71 = vld.sshfl [vmem:[#allocation1] sm:$0xff pattern:$0x75316420]
    %v72 = vld.sshfl [vmem:[#allocation1 + $0x8] sm:$0xff pattern:$0x75316420]
    %v73 = vld.sshfl [vmem:[#allocation1 + $0x10] sm:$0xff pattern:$0x75316420]
    %v74 = vld.sshfl [vmem:[#allocation1 + $0x18] sm:$0xff pattern:$0x75316420]
    %vm79 = vcmask 1043456
    %v80 = vsel %vm79, %v71, 0.0
    %v81 = vrot.slane %v80, 4
    %v82 = vadd.f32 %v80, %v81
    %v83 = vrot.slane %v82, 2
    %v84 = vadd.f32 %v82, %v83
    %v85 = vrot.slane %v84, 1
    %v86 = vadd.f32 %v84, %v85
    %v87 = vsel %vm79, %v72, 0.0
    %v88 = vrot.slane %v87, 4
    %v89 = vadd.f32 %v87, %v88
    %v90 = vrot.slane %v89, 2
    %v91 = vadd.f32 %v89, %v90
    %v92 = vrot.slane %v91, 1
    %v93 = vadd.f32 %v91, %v92
    %v94 = vsel %vm79, %v73, 0.0
    %v95 = vrot.slane %v94, 4
    %v96 = vadd.f32 %v94, %v95
    %v97 = vrot.slane %v96, 2
    %v98 = vadd.f32 %v96, %v97
    %v99 = vrot.slane %v98, 1
    %v100 = vadd.f32 %v98, %v99
    %v101 = vsel %vm79, %v74, 0.0
    %v102 = vrot.slane %v101, 4
    %v103 = vadd.f32 %v101, %v102
    %v104 = vrot.slane %v103, 2
    %v105 = vadd.f32 %v103, %v104
    %v106 = vrot.slane %v105, 1
    %v107 = vadd.f32 %v105, %v106
    %v112 = vrot.slane %v93, 7
    %v113 = vrot.slane %v100, 6
    %v114 = vrot.slane %v107, 5
    %vm115 = vcmask 1040384
    %v116 = vsel %vm115, %v86, %v112
    %vm117 = vcmask 1042434
    %v118 = vsel %vm117, %v113, %v114
    %vm119 = vcmask 1041408
    %v120 = vsel %vm119, %v116, %v118
    %v122 = vlaneseq
    %vm123 = vcmp.ge.s32.totalorder %v122, 0
    %vm124 = vcmp.lt.s32.totalorder %v122, 512
    %vm125 = vmand %vm123, %vm124
    %126 = vst.msk [vmem:[#allocation7] sm:$0xf] %vm125, %v120
    // Predicated region
    $region18: #{tpu_custom_call.1} parent=1 // pred_check
      _
    $region19: #{tpu_custom_call.1} parent=1 // pred_check_branch
      %128 = sbr.rel (0) target = $region21
    $region20: #{tpu_custom_call.1} parent=1 // pred_region
      %130 = vsyncadd [#allocation4], 0
      %s132 = sshll.u32 [#allocation7], 4
      %s133 = int_to_ptr.vmem [resolvable:$true] %s132
      %s134 = sshll.u32 %s2, 4
      %s135 = int_to_ptr.hbm [resolvable:$true] %s134
      %137 = dma.vmem_to_hbm [thread:$0]  %s133, 64, %s135, [#allocation4]
    $region21: #{tpu_custom_call.1} parent=1 // pred_fallthru
      _
    // Predicated region
    $region22: #{tpu_custom_call.1} parent=1 // pred_check
      _
    $region23: #{tpu_custom_call.1} parent=1 // pred_check_branch
      %139 = sbr.rel (0) target = $region25
    $region24: #{tpu_custom_call.1} parent=1 // pred_region
      %141 = dma.done [#allocation4], 64
    $region25: #{tpu_custom_call.1} parent=1 // pred_fallthru
      _
    %142 = vsyncpa [#allocation3], 1
    %143 = vsyncpa [#allocation6], 1
    %144 = vsyncpa [#allocation4], 1

</llo_original>
